<compile_context>
chip_gen: v7x
topology: tpu7x:2x2x1
jax: 0.10.0
libtpu: 0.0.40
codegen_flags: <defaults>
</compile_context>

<pallas_src>
import jax
import jax.numpy as jnp
from jax.experimental import pallas as pl
from jax.experimental.pallas import tpu as pltpu

# ---- problem sizes (small, consistent with the module) ----------------------
EMBED = 32        # embed_channels (C)
GROUPS = 4        # groups (G)
INNER = EMBED // GROUPS
N_PTS = 256       # number of points (N)
NSAMPLE = 16      # neighbors per point (S)
TN = 128          # point tile -> grid of 2 steps (sweep: 64 on v5e)
TW = 2 * EMBED + 3   # gather-table width: [k | v | coord]


# ---- kernel 1: fused q/k/v projection + bf16 gather-table build (runs once) --
def qkv_table_kernel(feat_ref, coord_ref, wqkv_ref, bqkv_ref, q_ref, table_ref):
    c = q_ref.shape[-1]
    x = feat_ref[...]                                                   # [N, C]
    qkv = jnp.dot(x, wqkv_ref[...],
                  preferred_element_type=jnp.float32) + bqkv_ref[...]   # [N, 3C]
    q = jnp.maximum(qkv[:, :c], 0.0)          # ReLU on q (BN already folded)
    k = jnp.maximum(qkv[:, c:2 * c], 0.0)     # ReLU on k
    v = qkv[:, 2 * c:]                        # no ReLU on v
    q_ref[...] = q
    # gather table columns: [k | v | coord] -> bf16 (one fused gather matmul)
    table = jnp.concatenate([k, v, coord_ref[...]], axis=1)             # [N, 2C+3]
    table_ref[...] = table.astype(jnp.bfloat16)


# ---- kernel 2: fused gather + positional bias + weight encoding + attention --
def gva_kernel(idx_ref, q_ref, ctr_ref, table_ref,
               wp1_ref, bp1_ref, wp2_ref, bp2_ref,
               egf_ref, bweg_ref, wwe_ref, bwe_ref, expand_ref,
               out_ref):
    tn, s = idx_ref.shape
    n = table_ref.shape[0]
    c = out_ref.shape[-1]
    g = egf_ref.shape[-1]

    idx = idx_ref[...]                                                  # [TN, S]
    mask = (idx >= 0).astype(jnp.float32)                               # [TN, S]

    # --- one fused bf16 one-hot gather of k, v AND coord (padded -1 -> zeros)
    point_ids = jax.lax.broadcasted_iota(jnp.int32, (tn, s, n), 2)
    onehot = (idx[:, :, None] == point_ids).astype(jnp.bfloat16)
    onehot = onehot.reshape(tn * s, n)                                  # [TN*S, N]
    gathered = jnp.dot(onehot, table_ref[...],
                       preferred_element_type=jnp.float32)              # [TN*S, 2C+3]
    key_g = gathered[:, :c].reshape(tn, s, c)
    val_g = gathered[:, c:2 * c].reshape(tn, s, c)
    pos_g = gathered[:, 2 * c:2 * c + 3].reshape(tn, s, 3)

    ctr = ctr_ref[...]                                                  # [TN, 3]
    pos = (pos_g - ctr[:, None, :]) * mask[:, :, None]                  # [TN, S, 3]

    # --- linear_p_bias: Linear(3,C)+BN fold as 3 VPU FMAs, ReLU, Linear(C,C) --
    w1 = wp1_ref[...]                                                   # [3, C]
    h = (pos[..., 0:1] * w1[0:1, :] + pos[..., 1:2] * w1[1:2, :]
         + pos[..., 2:3] * w1[2:3, :] + bp1_ref[...])
    h = jnp.maximum(h, 0.0)                                             # [TN, S, C]
    peb = jnp.dot(h.reshape(tn * s, c), wp2_ref[...],
                  preferred_element_type=jnp.float32) + bp2_ref[...]
    peb = peb.reshape(tn, s, c)

    # --- relation + weight encoding (GroupedLinear weight & BN folded in egf) -
    q_tile = q_ref[...]                                                 # [TN, C]
    rel = key_g - q_tile[:, None, :] + peb                              # [TN, S, C]
    val = val_g + peb                                                   # [TN, S, C]

    w = jnp.dot(rel.reshape(tn * s, c), egf_ref[...],
                preferred_element_type=jnp.float32) + bweg_ref[...]     # [TN*S, G]
    w = jnp.maximum(w, 0.0)
    w = jnp.dot(w, wwe_ref[...],
                preferred_element_type=jnp.float32) + bwe_ref[...]
    w = w.reshape(tn, s, g)

    # --- softmax over neighbor dim, then mask padded slots (matches module) ---
    w = jnp.exp(w - jnp.max(w, axis=1, keepdims=True))
    w = w * pl.reciprocal(jnp.sum(w, axis=1, keepdims=True), approx=True)
    w = w * mask[:, :, None]

    # --- expand group weights to channels (0/1 matrix prebuilt in wrapper) ----
    w_exp = jnp.dot(w.reshape(tn * s, g), expand_ref[...],
                    preferred_element_type=jnp.float32).reshape(tn, s, c)

    out_ref[...] = jnp.sum(val * w_exp, axis=1)                         # [TN, C]


# ---- wrapper ------------------------------------------------------------------
def grouped_vector_attention(feat, coord, reference_index, p):
    n, c = feat.shape
    s = reference_index.shape[1]
    g = GROUPS
    inner = c // g
    grid = (n // TN,)

    # --- constant folding (once, outside the hot path) ------------------------
    wq_f = p["wq"] * p["q_scale"]
    bq_f = p["bq"] * p["q_scale"] + p["q_bias"]
    wk_f = p["wk"] * p["k_scale"]
    bk_f = p["bk"] * p["k_scale"] + p["k_bias"]
    wqkv = jnp.concatenate([wq_f, wk_f, p["wv"]], axis=1)               # [C, 3C]
    bqkv = jnp.concatenate([bq_f, bk_f, p["bv"]], axis=1)               # [1, 3C]
    wp1_f = p["wp1"] * p["p_scale"]                                     # [3, C]
    bp1_f = p["bp1"] * p["p_scale"] + p["p_bias"]                       # [1, C]
    # GroupedLinear + its BN folded into one [C, G] matrix
    eg = jnp.repeat(jnp.eye(g, dtype=jnp.float32), inner, axis=0)       # [C, G]
    egf = p["glw"].reshape(c, 1) * eg * p["we_scale"]                   # [C, G]
    bweg = p["we_bias"]                                                 # [1, G]
    # group -> channel expansion matrix (hoisted out of the kernel)
    expand = jnp.repeat(jnp.eye(g, dtype=jnp.float32), inner, axis=1)   # [G, C]

    # --- kernel 1: q + bf16 gather table, one shot (no grid) ------------------
    q_all, table = pl.pallas_call(
        qkv_table_kernel,
        out_shape=(jax.ShapeDtypeStruct((n, c), jnp.float32),
                   jax.ShapeDtypeStruct((n, TW), jnp.bfloat16)),
    )(feat, coord, wqkv, bqkv)

    def full2(shape):
        return pl.BlockSpec(shape, lambda i: (0, 0))

    # --- kernel 2: fused attention, "parallel" grid (no carried state) --------
    out = pl.pallas_call(
        gva_kernel,
        out_shape=jax.ShapeDtypeStruct((n, c), jnp.float32),
        grid=grid,
        in_specs=[
            pl.BlockSpec((TN, s), lambda i: (i, 0)),    # reference_index tile
            pl.BlockSpec((TN, c), lambda i: (i, 0)),    # q tile
            pl.BlockSpec((TN, 3), lambda i: (i, 0)),    # center coords tile
            full2((n, TW)),                             # bf16 gather table (resident)
            full2((3, c)), full2((1, c)),               # pos linear 1 (BN folded)
            full2((c, c)), full2((1, c)),               # pos linear 2
            full2((c, g)), full2((1, g)),               # grouped-linear fold + bias
            full2((g, g)), full2((1, g)),               # weight-encoding linear
            full2((g, c)),                              # group -> channel expansion
        ],
        out_specs=pl.BlockSpec((TN, c), lambda i: (i, 0)),
        compiler_params=pltpu.CompilerParams(
            # no state is carried across tiles -> safe to shard over TCs (v7x)
            dimension_semantics=("parallel",),
            # ~2x the estimated per-tile footprint; leaves headroom on v7x 64 MiB
            vmem_limit_bytes=24 * 1024 * 1024,
        ),
    )(reference_index, q_all, coord, table,
      wp1_f, bp1_f, p["wp2"], p["bp2"],
      egf, bweg, p["wwe"], p["bwe"], expand)
    return out


# ---- pure-JAX reference (sanity check) -----------------------------------------
def reference(feat, coord, reference_index, p):
    relu = lambda x: jnp.maximum(x, 0.0)
    q = relu((feat @ p["wq"] + p["bq"]) * p["q_scale"] + p["q_bias"])
    k = relu((feat @ p["wk"] + p["bk"]) * p["k_scale"] + p["k_bias"])
    v = feat @ p["wv"] + p["bv"]
    n, c = feat.shape
    g = GROUPS
    mask = (reference_index >= 0).astype(jnp.float32)
    k_pad = jnp.concatenate([k, jnp.zeros((1, c))], axis=0)
    v_pad = jnp.concatenate([v, jnp.zeros((1, c))], axis=0)
    c_pad = jnp.concatenate([coord, jnp.zeros((1, 3))], axis=0)
    key_g = k_pad[reference_index]
    val_g = v_pad[reference_index]
    pos = (c_pad[reference_index] - coord[:, None, :]) * mask[:, :, None]
    rel = key_g - q[:, None, :]
    h = relu((pos @ p["wp1"] + p["bp1"]) * p["p_scale"] + p["p_bias"])
    peb = h @ p["wp2"] + p["bp2"]
    rel = rel + peb
    val_g = val_g + peb
    w = (rel * p["glw"]).reshape(n, -1, g, INNER).sum(-1)
    w = relu(w * p["we_scale"] + p["we_bias"])
    w = w @ p["wwe"] + p["bwe"]
    w = jax.nn.softmax(w, axis=1)
    w = w * mask[:, :, None]
    valr = val_g.reshape(n, -1, g, INNER)
    out = jnp.einsum("nsgi,nsg->ngi", valr, w)
    return out.reshape(n, c)


# ---- deterministic parameter construction ---------------------------------------
def make_params(key, c, g):
    keys = iter(jax.random.split(key, 32))

    def nk():
        return next(keys)

    def lin(kin, kout):
        w = 0.1 * jax.random.normal(nk(), (kin, kout), jnp.float32)
        b = 0.05 * jax.random.normal(nk(), (1, kout), jnp.float32)
        return w, b

    def bn(nc):
        gamma = 1.0 + 0.1 * jax.random.normal(nk(), (1, nc), jnp.float32)
        beta = 0.1 * jax.random.normal(nk(), (1, nc), jnp.float32)
        mean = 0.05 * jax.random.normal(nk(), (1, nc), jnp.float32)
        var = 1.0 + jnp.abs(0.1 * jax.random.normal(nk(), (1, nc), jnp.float32))
        scale = gamma / jnp.sqrt(var + 1e-5)
        bias = beta - mean * scale
        return scale, bias

    p = {}
    p["wq"], p["bq"] = lin(c, c)
    p["q_scale"], p["q_bias"] = bn(c)
    p["wk"], p["bk"] = lin(c, c)
    p["k_scale"], p["k_bias"] = bn(c)
    p["wv"], p["bv"] = lin(c, c)
    p["wp1"], p["bp1"] = lin(3, c)
    p["p_scale"], p["p_bias"] = bn(c)
    p["wp2"], p["bp2"] = lin(c, c)
    p["glw"] = 0.1 * jax.random.normal(nk(), (1, c), jnp.float32)   # GroupedLinear
    p["we_scale"], p["we_bias"] = bn(g)
    p["wwe"], p["bwe"] = lin(g, g)
    return p


if __name__ == "__main__":
    key = jax.random.PRNGKey(0)
    k_feat, k_coord, k_idx, k_drop, k_param = jax.random.split(key, 5)

    feat = jax.random.normal(k_feat, (N_PTS, EMBED), jnp.float32)
    coord = jax.random.normal(k_coord, (N_PTS, 3), jnp.float32)
    reference_index = jax.random.randint(k_idx, (N_PTS, NSAMPLE), 0, N_PTS, jnp.int32)
    # mark ~20% of neighbor slots as padding (-1), like pointops KNN padding
    pad = jax.random.uniform(k_drop, (N_PTS, NSAMPLE)) < 0.2
    reference_index = jnp.where(pad, -1, reference_index)

    params = make_params(k_param, EMBED, GROUPS)

    out = grouped_vector_attention(feat, coord, reference_index, params)
    out = jax.block_until_ready(out)

    ref = reference(feat, coord, reference_index, params)
    assert out.shape == (N_PTS, EMBED)
    # tolerance covers the bf16 gather table (k/v/coord values rounded once),
    # the approximate softmax reciprocal, and BN constant folding
    assert jnp.allclose(out, ref, rtol=1e-2, atol=1e-2), "mismatch vs JAX reference"

    print("KERNEL_OK")
</pallas_src>

<mosaic_0001>
module attributes {stable_mosaic.version = 11 : i64} {
  func.func @qkv_table_kernel(%arg0: memref<256x32xf32, #tpu.memory_space<vmem>>, %arg1: memref<256x3xf32, #tpu.memory_space<vmem>>, %arg2: memref<32x96xf32, #tpu.memory_space<vmem>>, %arg3: memref<1x96xf32, #tpu.memory_space<vmem>>, %arg4: memref<256x32xf32, #tpu.memory_space<vmem>>, %arg5: memref<256x67xbf16, #tpu.memory_space<vmem>>) attributes {dimension_semantics = [], scalar_prefetch = 0 : i64, scratch_operands = 0 : i64, tpu.core_type = #tpu.core_type<tc>} {
    %c0 = arith.constant 0 : index
    %c0_0 = arith.constant 0 : index
    %0 = vector.load %arg0[%c0, %c0_0] : memref<256x32xf32, #tpu.memory_space<vmem>>, vector<256x32xf32>
    %c0_1 = arith.constant 0 : index
    %c0_2 = arith.constant 0 : index
    %1 = vector.load %arg2[%c0_1, %c0_2] : memref<32x96xf32, #tpu.memory_space<vmem>>, vector<32x96xf32>
    %cst = arith.constant dense<0.000000e+00> : vector<256x96xf32>
    %2 = tpu.matmul %0, %1, %cst {dimension_numbers = #tpu.dot_dimension_numbers<[1], [0], [0], [1], [0, 0, 1, 1], [], []>} : vector<256x32xf32>, vector<32x96xf32>, vector<256x96xf32> -> vector<256x96xf32>
    %c0_3 = arith.constant 0 : index
    %c0_4 = arith.constant 0 : index
    %3 = vector.load %arg3[%c0_3, %c0_4] : memref<1x96xf32, #tpu.memory_space<vmem>>, vector<1x96xf32>
    %4 = vector.broadcast %3 : vector<1x96xf32> to vector<256x96xf32>
    %5 = arith.addf %2, %4 : vector<256x96xf32>
    %6 = vector.extract_strided_slice %5 {offsets = [0, 0], sizes = [256, 32], strides = [1, 1]} : vector<256x96xf32> to vector<256x32xf32>
    %cst_5 = arith.constant 0.000000e+00 : f32
    %7 = vector.broadcast %cst_5 : f32 to vector<256x32xf32>
    %8 = arith.maximumf %6, %7 : vector<256x32xf32>
    %9 = vector.extract_strided_slice %5 {offsets = [0, 32], sizes = [256, 32], strides = [1, 1]} : vector<256x96xf32> to vector<256x32xf32>
    %cst_6 = arith.constant 0.000000e+00 : f32
    %10 = vector.broadcast %cst_6 : f32 to vector<256x32xf32>
    %11 = arith.maximumf %9, %10 : vector<256x32xf32>
    %12 = vector.extract_strided_slice %5 {offsets = [0, 64], sizes = [256, 32], strides = [1, 1]} : vector<256x96xf32> to vector<256x32xf32>
    %c0_7 = arith.constant 0 : index
    %c0_8 = arith.constant 0 : index
    %13 = vector.load %arg4[%c0_7, %c0_8] : memref<256x32xf32, #tpu.memory_space<vmem>>, vector<256x32xf32>
    tpu.vector_store %arg4[%c0_7, %c0_8], %8 {strides = array<i32>} : memref<256x32xf32, #tpu.memory_space<vmem>>, vector<256x32xf32>,
    %c0_9 = arith.constant 0 : index
    %c0_10 = arith.constant 0 : index
    %14 = vector.load %arg1[%c0_9, %c0_10] : memref<256x3xf32, #tpu.memory_space<vmem>>, vector<256x3xf32>
    %15 = tpu.concatenate %11, %12, %14 in 1 : vector<256x32xf32>, vector<256x32xf32>, vector<256x3xf32> -> vector<256x67xf32>
    %16 = arith.truncf %15 : vector<256x67xf32> to vector<256x67xbf16>
    %c0_11 = arith.constant 0 : index
    %c0_12 = arith.constant 0 : index
    %17 = vector.load %arg5[%c0_11, %c0_12] : memref<256x67xbf16, #tpu.memory_space<vmem>>, vector<256x67xbf16>
    tpu.vector_store %arg5[%c0_11, %c0_12], %16 {strides = array<i32>} : memref<256x67xbf16, #tpu.memory_space<vmem>>, vector<256x67xbf16>,
    return
  }
}

</mosaic_0001>

<llo_original>
// kernel: tpu_custom_call.1
$region0: #{tpu_custom_call.1}
  #allocation0 [shape = 'u32[]', space=smem, size = 0x4, offset = 0x4, fixed_abs, tag = 'smem constant byte address 0x4 - core index']
  #allocation1 [shape = 'u32[144,128]{1,0:T(1,128)}', space=vmem, size = 0x12000, scoped, tag = 'internal scratch']
  %s0 = inlined_call_operand.vmem [shape: f32[256,32], index: 0, kind: input, shape index: {}]
  %s1 = inlined_call_operand.vmem [shape: f32[256,3], index: 1, kind: input, shape index: {}]
  %s2 = inlined_call_operand.vmem [shape: f32[32,96], index: 2, kind: input, shape index: {}]
  %s3 = inlined_call_operand.vmem [shape: f32[1,96], index: 3, kind: input, shape index: {}]
  %s4 = inlined_call_operand.vmem [shape: f32[256,32], index: 4, kind: output, shape index: {0}]
  %s5 = inlined_call_operand.vmem [shape: bf16[256,67], index: 5, kind: output, shape index: {1}]
  %6 = xla_tuple %s4, %s5
  %s7 = sld [smem:[#allocation0]]
  $region34: #{tpu_custom_call.1} parent=0
    _
  %s9 = ssub.s32 1, %s7
  %s10 = scalar_select 0, %s9, %s7
  // Predicated region
  $region2: #{tpu_custom_call.1} parent=0 // pred_check
    _
  $region3: #{tpu_custom_call.1} parent=0 // pred_check_branch
    %12 = sbr.rel (0) target = $region5
  $region4: #{tpu_custom_call.1} parent=0 // pred_region
    _
  $region5: #{tpu_custom_call.1} parent=0 // pred_fallthru
    _
  // Predicated region
  $region6: #{tpu_custom_call.1} parent=0 // pred_check
    _
  $region7: #{tpu_custom_call.1} parent=0 // pred_check_branch
    %14 = sbr.rel (0) target = $region9
  $region8: #{tpu_custom_call.1} parent=0 // pred_region
    _
  $region9: #{tpu_custom_call.1} parent=0 // pred_fallthru
    _
  // Predicated region
  $region10: #{tpu_custom_call.1} parent=0 // pred_check
    _
  $region11: #{tpu_custom_call.1} parent=0 // pred_check_branch
    %16 = sbr.rel (0) target = $region13
  $region12: #{tpu_custom_call.1} parent=0 // pred_region
    _
  $region13: #{tpu_custom_call.1} parent=0 // pred_fallthru
    _
  // Predicated region
  $region14: #{tpu_custom_call.1} parent=0 // pred_check
    _
  $region15: #{tpu_custom_call.1} parent=0 // pred_check_branch
    %18 = sbr.rel (0) target = $region17
  $region16: #{tpu_custom_call.1} parent=0 // pred_region
    _
  $region17: #{tpu_custom_call.1} parent=0 // pred_fallthru
    _
  %v19 = vld [vmem:[%s0] sm:$0xff]
  %v20 = vld [vmem:[%s0 + $0x8] sm:$0xff]
  %v21 = vld [vmem:[%s0 + $0x10] sm:$0xff]
  %v22 = vld [vmem:[%s0 + $0x18] sm:$0xff]
  %v23 = vld [vmem:[%s0 + $0x20] sm:$0xff]
  %v24 = vld [vmem:[%s0 + $0x28] sm:$0xff]
  %v25 = vld [vmem:[%s0 + $0x30] sm:$0xff]
  %v26 = vld [vmem:[%s0 + $0x38] sm:$0xff]
  %v27 = vld [vmem:[%s0 + $0x40] sm:$0xff]
  %v28 = vld [vmem:[%s0 + $0x48] sm:$0xff]
  %v29 = vld [vmem:[%s0 + $0x50] sm:$0xff]
  %v30 = vld [vmem:[%s0 + $0x58] sm:$0xff]
  %v31 = vld [vmem:[%s0 + $0x60] sm:$0xff]
  %v32 = vld [vmem:[%s0 + $0x68] sm:$0xff]
  %v33 = vld [vmem:[%s0 + $0x70] sm:$0xff]
  %v34 = vld [vmem:[%s0 + $0x78] sm:$0xff]
  %v35 = vld [vmem:[%s0 + $0x80] sm:$0xff]
  %v36 = vld [vmem:[%s0 + $0x88] sm:$0xff]
  %v37 = vld [vmem:[%s0 + $0x90] sm:$0xff]
  %v38 = vld [vmem:[%s0 + $0x98] sm:$0xff]
  %v39 = vld [vmem:[%s0 + $0xa0] sm:$0xff]
  %v40 = vld [vmem:[%s0 + $0xa8] sm:$0xff]
  %v41 = vld [vmem:[%s0 + $0xb0] sm:$0xff]
  %v42 = vld [vmem:[%s0 + $0xb8] sm:$0xff]
  %v43 = vld [vmem:[%s0 + $0xc0] sm:$0xff]
  %v44 = vld [vmem:[%s0 + $0xc8] sm:$0xff]
  %v45 = vld [vmem:[%s0 + $0xd0] sm:$0xff]
  %v46 = vld [vmem:[%s0 + $0xd8] sm:$0xff]
  %v47 = vld [vmem:[%s0 + $0xe0] sm:$0xff]
  %v48 = vld [vmem:[%s0 + $0xe8] sm:$0xff]
  %v49 = vld [vmem:[%s0 + $0xf0] sm:$0xff]
  %v50 = vld [vmem:[%s0 + $0xf8] sm:$0xff]
  %v51 = vld [vmem:[%s2] sm:$0xff]
  %v52 = vld [vmem:[%s2 + $0x8] sm:$0xff]
  %v53 = vld [vmem:[%s2 + $0x10] sm:$0xff]
  %v54 = vld [vmem:[%s2 + $0x18] sm:$0xff]
  %v55 = vld [vmem:[%s3] sm:$0x1]
  %v57 = vlaneseq
  %v58 = vshrl.u32 %v57, 7
  %v59 = vsub.s32 0, %v58
  %v60 = vrot.slane %v55, %v59
  %vm62 = vcmask 261120
  %v64 = vsel %vm62, %v19, 0
  %v67 = vsel %vm62, %v20, 0
  %v70 = vsel %vm62, %v21, 0
  %v73 = vsel %vm62, %v22, 0
  %v76 = vsel %vm62, %v23, 0
  %v79 = vsel %vm62, %v24, 0
  %v82 = vsel %vm62, %v25, 0
  %v85 = vsel %vm62, %v26, 0
  %v88 = vsel %vm62, %v27, 0
  %v91 = vsel %vm62, %v28, 0
  %v94 = vsel %vm62, %v29, 0
  %v97 = vsel %vm62, %v30, 0
  %v100 = vsel %vm62, %v31, 0
  %v103 = vsel %vm62, %v32, 0
  %v106 = vsel %vm62, %v33, 0
  %v109 = vsel %vm62, %v34, 0
  %v112 = vsel %vm62, %v35, 0
  %v115 = vsel %vm62, %v36, 0
  %v118 = vsel %vm62, %v37, 0
  %v121 = vsel %vm62, %v38, 0
  %v124 = vsel %vm62, %v39, 0
  %v127 = vsel %vm62, %v40, 0
  %v130 = vsel %vm62, %v41, 0
  %v133 = vsel %vm62, %v42, 0
  %v136 = vsel %vm62, %v43, 0
  %v139 = vsel %vm62, %v44, 0
  %v142 = vsel %vm62, %v45, 0
  %v145 = vsel %vm62, %v46, 0
  %v148 = vsel %vm62, %v47, 0
  %v151 = vsel %vm62, %v48, 0
  %v154 = vsel %vm62, %v49, 0
  %v157 = vsel %vm62, %v50, 0
  %159 = vmatprep.subr.mxu0 0.0
  %160 = vmatpush1.msra.mxu0 %v51
  %161 = vmatprep.subr.mxu0 0.0
  %162 = vmatpush1.msra.mxu0 %v52
  %163 = vmatprep.subr.mxu0 0.0
  %164 = vmatpush1.msra.mxu0 %v53
  %165 = vmatprep.subr.mxu0 0.0
  %166 = vmatpush1.msra.mxu0 %v54
  %167 = vmatprep.subr.mxu0 0.0
  %168 = vmatpush1.msra.mxu0 0.0
  %169 = vmatprep.subr.mxu0 0.0
  %170 = vmatpush1.msra.mxu0 0.0
  %171 = vmatprep.subr.mxu0 0.0
  %172 = vmatpush1.msra.mxu0 0.0
  %173 = vmatprep.subr.mxu0 0.0
  %174 = vmatpush1.msra.mxu0 0.0
  %175 = vmatprep.subr.mxu0 0.0
  %176 = vmatpush1.msra.mxu0 0.0
  %177 = vmatprep.subr.mxu0 0.0
  %178 = vmatpush1.msra.mxu0 0.0
  %179 = vmatprep.subr.mxu0 0.0
  %180 = vmatpush1.msra.mxu0 0.0
  %181 = vmatprep.subr.mxu0 0.0
  %182 = vmatpush1.msra.mxu0 0.0
  %183 = vmatprep.subr.mxu0 0.0
  %184 = vmatpush1.msra.mxu0 0.0
  %185 = vmatprep.subr.mxu0 0.0
  %186 = vmatpush1.msra.mxu0 0.0
  %187 = vmatprep.subr.mxu0 0.0
  %188 = vmatpush1.msra.mxu0 0.0
  %189 = vmatprep.subr.mxu0 0.0
  %190 = vmatpush1.msra.mxu0 0.0
  %191 = vmatprep.subr.mxu0 0.0
  %192 = vmatpush1.msra.mxu0 0.0
  %193 = vmatprep.subr.mxu0 0.0
  %194 = vmatpush1.msra.mxu0 0.0
  %195 = vmatprep.subr.mxu0 0.0
  %196 = vmatpush1.msra.mxu0 0.0
  %197 = vmatprep.subr.mxu0 0.0
  %198 = vmatpush1.msra.mxu0 0.0
  %199 = vmatprep.subr.mxu0 0.0
  %200 = vmatpush1.msra.mxu0 0.0
  %201 = vmatprep.subr.mxu0 0.0
  %202 = vmatpush1.msra.mxu0 0.0
  %203 = vmatprep.subr.mxu0 0.0
  %204 = vmatpush1.msra.mxu0 0.0
  %205 = vmatprep.subr.mxu0 0.0
  %206 = vmatpush1.msra.mxu0 0.0
  %207 = vmatprep.subr.mxu0 0.0
  %208 = vmatpush1.msra.mxu0 0.0
  %209 = vmatprep.subr.mxu0 0.0
  %210 = vmatpush1.msra.mxu0 0.0
  %211 = vmatprep.subr.mxu0 0.0
  %212 = vmatpush1.msra.mxu0 0.0
  %213 = vmatprep.subr.mxu0 0.0
  %214 = vmatpush1.msra.mxu0 0.0
  %215 = vmatprep.subr.mxu0 0.0
  %216 = vmatpush1.msra.mxu0 0.0
  %217 = vmatprep.subr.mxu0 0.0
  %218 = vmatpush1.msra.mxu0 0.0
  %219 = vmatprep.subr.mxu0 0.0
  %220 = vmatpush1.msra.mxu0 0.0
  %221 = vmatprep.subr.mxu0 0.0
  %222 = vmatpush1.msra.mxu0 0.0
  %223 = vmatprep.mubr.f32.mxu0 0.0
  %224 = vmatmul.mubr.f32.gmra.mrb[0].mxu0 %v64
  %v225 = vpop.f32.mrb[0].mxu0
  %v226 = vadd.f32 %v60, %v225
  %v227 = vpop.f32.mrb[0].mxu0
  %228 = vmatprep.mubr.f32.mxu0 0.0
  %229 = vmatmul.mubr.f32.gmra.mrb[0].mxu0 %v67
  %v230 = vpop.f32.mrb[0].mxu0
  %v231 = vadd.f32 %v60, %v230
  %v232 = vpop.f32.mrb[0].mxu0
  %233 = vmatprep.mubr.f32.mxu0 0.0
  %234 = vmatmul.mubr.f32.gmra.mrb[0].mxu0 %v70
  %v235 = vpop.f32.mrb[0].mxu0
  %v236 = vadd.f32 %v60, %v235
  %v237 = vpop.f32.mrb[0].mxu0
  %238 = vmatprep.mubr.f32.mxu0 0.0
  %239 = vmatmul.mubr.f32.gmra.mrb[0].mxu0 %v73
  %v240 = vpop.f32.mrb[0].mxu0
  %v241 = vadd.f32 %v60, %v240
  %v242 = vpop.f32.mrb[0].mxu0
  %243 = vmatprep.mubr.f32.mxu0 0.0
  %244 = vmatmul.mubr.f32.gmra.mrb[0].mxu0 %v76
  %v245 = vpop.f32.mrb[0].mxu0
  %v246 = vadd.f32 %v60, %v245
  %v247 = vpop.f32.mrb[0].mxu0
  %248 = vmatprep.mubr.f32.mxu0 0.0
  %249 = vmatmul.mubr.f32.gmra.mrb[0].mxu0 %v79
  %v250 = vpop.f32.mrb[0].mxu0
  %v251 = vadd.f32 %v60, %v250
  %v252 = vpop.f32.mrb[0].mxu0
  %253 = vmatprep.mubr.f32.mxu0 0.0
  %254 = vmatmul.mubr.f32.gmra.mrb[0].mxu0 %v82
  %v255 = vpop.f32.mrb[0].mxu0
  %v256 = vadd.f32 %v60, %v255
  %v257 = vpop.f32.mrb[0].mxu0
  %258 = vmatprep.mubr.f32.mxu0 0.0
  %259 = vmatmul.mubr.f32.gmra.mrb[0].mxu0 %v85
  %v260 = vpop.f32.mrb[0].mxu0
  %v261 = vadd.f32 %v60, %v260
  %v262 = vpop.f32.mrb[0].mxu0
  %263 = vmatprep.mubr.f32.mxu0 0.0
  %264 = vmatmul.mubr.f32.gmra.mrb[0].mxu0 %v88
  %v265 = vpop.f32.mrb[0].mxu0
  %v266 = vadd.f32 %v60, %v265
  %v267 = vpop.f32.mrb[0].mxu0
  %268 = vmatprep.mubr.f32.mxu0 0.0
  %269 = vmatmul.mubr.f32.gmra.mrb[0].mxu0 %v91
  %v270 = vpop.f32.mrb[0].mxu0
  %v271 = vadd.f32 %v60, %v270
  %v272 = vpop.f32.mrb[0].mxu0
  %273 = vmatprep.mubr.f32.mxu0 0.0
  %274 = vmatmul.mubr.f32.gmra.mrb[0].mxu0 %v94
  %v275 = vpop.f32.mrb[0].mxu0
  %v276 = vadd.f32 %v60, %v275
  %v277 = vpop.f32.mrb[0].mxu0
  %278 = vmatprep.mubr.f32.mxu0 0.0
  %279 = vmatmul.mubr.f32.gmra.mrb[0].mxu0 %v97
  %v280 = vpop.f32.mrb[0].mxu0
  %v281 = vadd.f32 %v60, %v280
  %v282 = vpop.f32.mrb[0].mxu0
  %283 = vmatprep.mubr.f32.mxu0 0.0
  %284 = vmatmul.mubr.f32.gmra.mrb[0].mxu0 %v100
  %v285 = vpop.f32.mrb[0].mxu0
  %v286 = vadd.f32 %v60, %v285
  %v287 = vpop.f32.mrb[0].mxu0
  %288 = vmatprep.mubr.f32.mxu0 0.0
  %289 = vmatmul.mubr.f32.gmra.mrb[0].mxu0 %v103
  %v290 = vpop.f32.mrb[0].mxu0
  %v291 = vadd.f32 %v60, %v290
  %v292 = vpop.f32.mrb[0].mxu0
  %293 = vmatprep.mubr.f32.mxu0 0.0
  %294 = vmatmul.mubr.f32.gmra.mrb[0].mxu0 %v106
  %v295 = vpop.f32.mrb[0].mxu0
  %v296 = vadd.f32 %v60, %v295
  %v297 = vpop.f32.mrb[0].mxu0
  %298 = vmatprep.mubr.f32.mxu0 0.0
  %299 = vmatmul.mubr.f32.gmra.mrb[0].mxu0 %v109
  %v300 = vpop.f32.mrb[0].mxu0
  %v301 = vadd.f32 %v60, %v300
  %v302 = vpop.f32.mrb[0].mxu0
  %303 = vmatprep.mubr.f32.mxu0 0.0
  %304 = vmatmul.mubr.f32.gmra.mrb[0].mxu0 %v112
  %v305 = vpop.f32.mrb[0].mxu0
  %v306 = vadd.f32 %v60, %v305
  %v307 = vpop.f32.mrb[0].mxu0
  %308 = vmatprep.mubr.f32.mxu0 0.0
  %309 = vmatmul.mubr.f32.gmra.mrb[0].mxu0 %v115
  %v310 = vpop.f32.mrb[0].mxu0
  %v311 = vadd.f32 %v60, %v310
  %v312 = vpop.f32.mrb[0].mxu0
  %313 = vmatprep.mubr.f32.mxu0 0.0
  %314 = vmatmul.mubr.f32.gmra.mrb[0].mxu0 %v118
  %v315 = vpop.f32.mrb[0].mxu0
  %v316 = vadd.f32 %v60, %v315
  %v317 = vpop.f32.mrb[0].mxu0
  %318 = vmatprep.mubr.f32.mxu0 0.0
  %319 = vmatmul.mubr.f32.gmra.mrb[0].mxu0 %v121
  %v320 = vpop.f32.mrb[0].mxu0
  %v321 = vadd.f32 %v60, %v320
  %v322 = vpop.f32.mrb[0].mxu0
  %323 = vmatprep.mubr.f32.mxu0 0.0
  %324 = vmatmul.mubr.f32.gmra.mrb[0].mxu0 %v124
  %v325 = vpop.f32.mrb[0].mxu0
  %v326 = vadd.f32 %v60, %v325
  %v327 = vpop.f32.mrb[0].mxu0
  %328 = vmatprep.mubr.f32.mxu0 0.0
  %329 = vmatmul.mubr.f32.gmra.mrb[0].mxu0 %v127
  %v330 = vpop.f32.mrb[0].mxu0
  %v331 = vadd.f32 %v60, %v330
  %v332 = vpop.f32.mrb[0].mxu0
  %333 = vmatprep.mubr.f32.mxu0 0.0
  %334 = vmatmul.mubr.f32.gmra.mrb[0].mxu0 %v130
  %v335 = vpop.f32.mrb[0].mxu0
  %v336 = vadd.f32 %v60, %v335
  %v337 = vpop.f32.mrb[0].mxu0
  %338 = vmatprep.mubr.f32.mxu0 0.0
  %339 = vmatmul.mubr.f32.gmra.mrb[0].mxu0 %v133
  %v340 = vpop.f32.mrb[0].mxu0
  %v341 = vadd.f32 %v60, %v340
  %v342 = vpop.f32.mrb[0].mxu0
  %343 = vmatprep.mubr.f32.mxu0 0.0
  %344 = vmatmul.mubr.f32.gmra.mrb[0].mxu0 %v136
  %v345 = vpop.f32.mrb[0].mxu0
  %v346 = vadd.f32 %v60, %v345
  %v347 = vpop.f32.mrb[0].mxu0
  %348 = vmatprep.mubr.f32.mxu0 0.0
  %349 = vmatmul.mubr.f32.gmra.mrb[0].mxu0 %v139
  %v350 = vpop.f32.mrb[0].mxu0
  %v351 = vadd.f32 %v60, %v350
  %v352 = vpop.f32.mrb[0].mxu0
  %353 = vmatprep.mubr.f32.mxu0 0.0
  %354 = vmatmul.mubr.f32.gmra.mrb[0].mxu0 %v142
  %v355 = vpop.f32.mrb[0].mxu0
  %v356 = vadd.f32 %v60, %v355
  %v357 = vpop.f32.mrb[0].mxu0
  %358 = vmatprep.mubr.f32.mxu0 0.0
  %359 = vmatmul.mubr.f32.gmra.mrb[0].mxu0 %v145
  %v360 = vpop.f32.mrb[0].mxu0
  %v361 = vadd.f32 %v60, %v360
  %v362 = vpop.f32.mrb[0].mxu0
  %363 = vmatprep.mubr.f32.mxu0 0.0
  %364 = vmatmul.mubr.f32.gmra.mrb[0].mxu0 %v148
  %v365 = vpop.f32.mrb[0].mxu0
  %v366 = vadd.f32 %v60, %v365
  %v367 = vpop.f32.mrb[0].mxu0
  %368 = vmatprep.mubr.f32.mxu0 0.0
  %369 = vmatmul.mubr.f32.gmra.mrb[0].mxu0 %v151
  %v370 = vpop.f32.mrb[0].mxu0
  %v371 = vadd.f32 %v60, %v370
  %v372 = vpop.f32.mrb[0].mxu0
  %373 = vmatprep.mubr.f32.mxu0 0.0
  %374 = vmatmul.mubr.f32.gmra.mrb[0].mxu0 %v154
  %v375 = vpop.f32.mrb[0].mxu0
  %v376 = vadd.f32 %v60, %v375
  %v377 = vpop.f32.mrb[0].mxu0
  %378 = vmatprep.mubr.f32.mxu0 0.0
  %379 = vmatmul.mubr.f32.gmra.mrb[0].mxu0 %v157
  %v380 = vpop.f32.mrb[0].mxu0
  %v381 = vadd.f32 %v60, %v380
  %v382 = vpop.f32.mrb[0].mxu0
  %383 = vdwg.mxu0
  %v384 = vmax.f32 %v226, 0.0
  %v385 = vmax.f32 %v231, 0.0
  %v386 = vmax.f32 %v236, 0.0
  %v387 = vmax.f32 %v241, 0.0
  %v388 = vmax.f32 %v246, 0.0
  %v389 = vmax.f32 %v251, 0.0
  %v390 = vmax.f32 %v256, 0.0
  %v391 = vmax.f32 %v261, 0.0
  %v392 = vmax.f32 %v266, 0.0
  %v393 = vmax.f32 %v271, 0.0
  %v394 = vmax.f32 %v276, 0.0
  %v395 = vmax.f32 %v281, 0.0
  %v396 = vmax.f32 %v286, 0.0
  %v397 = vmax.f32 %v291, 0.0
  %v398 = vmax.f32 %v296, 0.0
  %v399 = vmax.f32 %v301, 0.0
  %v400 = vmax.f32 %v306, 0.0
  %v401 = vmax.f32 %v311, 0.0
  %v402 = vmax.f32 %v316, 0.0
  %v403 = vmax.f32 %v321, 0.0
  %v404 = vmax.f32 %v326, 0.0
  %v405 = vmax.f32 %v331, 0.0
  %v406 = vmax.f32 %v336, 0.0
  %v407 = vmax.f32 %v341, 0.0
  %v408 = vmax.f32 %v346, 0.0
  %v409 = vmax.f32 %v351, 0.0
  %v410 = vmax.f32 %v356, 0.0
  %v411 = vmax.f32 %v361, 0.0
  %v412 = vmax.f32 %v366, 0.0
  %v413 = vmax.f32 %v371, 0.0
  %v414 = vmax.f32 %v376, 0.0
  %v415 = vmax.f32 %v381, 0.0
  %416 = vst.msk [vmem:[%s4] sm:$0xff] %vm62, %v384
  %417 = vst.msk [vmem:[%s4 + $0x8] sm:$0xff] %vm62, %v385
  %418 = vst.msk [vmem:[%s4 + $0x10] sm:$0xff] %vm62, %v386
  %419 = vst.msk [vmem:[%s4 + $0x18] sm:$0xff] %vm62, %v387
  %420 = vst.msk [vmem:[%s4 + $0x20] sm:$0xff] %vm62, %v388
  %421 = vst.msk [vmem:[%s4 + $0x28] sm:$0xff] %vm62, %v389
  %422 = vst.msk [vmem:[%s4 + $0x30] sm:$0xff] %vm62, %v390
  %423 = vst.msk [vmem:[%s4 + $0x38] sm:$0xff] %vm62, %v391
  %424 = vst.msk [vmem:[%s4 + $0x40] sm:$0xff] %vm62, %v392
  %425 = vst.msk [vmem:[%s4 + $0x48] sm:$0xff] %vm62, %v393
  %426 = vst.msk [vmem:[%s4 + $0x50] sm:$0xff] %vm62, %v394
  %427 = vst.msk [vmem:[%s4 + $0x58] sm:$0xff] %vm62, %v395
  %428 = vst.msk [vmem:[%s4 + $0x60] sm:$0xff] %vm62, %v396
  %429 = vst.msk [vmem:[%s4 + $0x68] sm:$0xff] %vm62, %v397
  %430 = vst.msk [vmem:[%s4 + $0x70] sm:$0xff] %vm62, %v398
  %431 = vst.msk [vmem:[%s4 + $0x78] sm:$0xff] %vm62, %v399
  %432 = vst.msk [vmem:[%s4 + $0x80] sm:$0xff] %vm62, %v400
  %433 = vst.msk [vmem:[%s4 + $0x88] sm:$0xff] %vm62, %v401
  %434 = vst.msk [vmem:[%s4 + $0x90] sm:$0xff] %vm62, %v402
  %435 = vst.msk [vmem:[%s4 + $0x98] sm:$0xff] %vm62, %v403
  %436 = vst.msk [vmem:[%s4 + $0xa0] sm:$0xff] %vm62, %v404
  %437 = vst.msk [vmem:[%s4 + $0xa8] sm:$0xff] %vm62, %v405
  %438 = vst.msk [vmem:[%s4 + $0xb0] sm:$0xff] %vm62, %v406
  %439 = vst.msk [vmem:[%s4 + $0xb8] sm:$0xff] %vm62, %v407
  %440 = vst.msk [vmem:[%s4 + $0xc0] sm:$0xff] %vm62, %v408
  %441 = vst.msk [vmem:[%s4 + $0xc8] sm:$0xff] %vm62, %v409
  %442 = vst.msk [vmem:[%s4 + $0xd0] sm:$0xff] %vm62, %v410
  %443 = vst.msk [vmem:[%s4 + $0xd8] sm:$0xff] %vm62, %v411
  %444 = vst.msk [vmem:[%s4 + $0xe0] sm:$0xff] %vm62, %v412
  %445 = vst.msk [vmem:[%s4 + $0xe8] sm:$0xff] %vm62, %v413
  %446 = vst.msk [vmem:[%s4 + $0xf0] sm:$0xff] %vm62, %v414
  %447 = vst.msk [vmem:[%s4 + $0xf8] sm:$0xff] %vm62, %v415
  %v448 = vld [vmem:[%s1] sm:$0xff]
  %v449 = vld [vmem:[%s1 + $0x8] sm:$0xff]
  %v450 = vld [vmem:[%s1 + $0x10] sm:$0xff]
  %v451 = vld [vmem:[%s1 + $0x18] sm:$0xff]
  %v452 = vld [vmem:[%s1 + $0x20] sm:$0xff]
  %v453 = vld [vmem:[%s1 + $0x28] sm:$0xff]
  %v454 = vld [vmem:[%s1 + $0x30] sm:$0xff]
  %v455 = vld [vmem:[%s1 + $0x38] sm:$0xff]
  %v456 = vld [vmem:[%s1 + $0x40] sm:$0xff]
  %v457 = vld [vmem:[%s1 + $0x48] sm:$0xff]
  %v458 = vld [vmem:[%s1 + $0x50] sm:$0xff]
  %v459 = vld [vmem:[%s1 + $0x58] sm:$0xff]
  %v460 = vld [vmem:[%s1 + $0x60] sm:$0xff]
  %v461 = vld [vmem:[%s1 + $0x68] sm:$0xff]
  %v462 = vld [vmem:[%s1 + $0x70] sm:$0xff]
  %v463 = vld [vmem:[%s1 + $0x78] sm:$0xff]
  %v464 = vld [vmem:[%s1 + $0x80] sm:$0xff]
  %v465 = vld [vmem:[%s1 + $0x88] sm:$0xff]
  %v466 = vld [vmem:[%s1 + $0x90] sm:$0xff]
  %v467 = vld [vmem:[%s1 + $0x98] sm:$0xff]
  %v468 = vld [vmem:[%s1 + $0xa0] sm:$0xff]
  %v469 = vld [vmem:[%s1 + $0xa8] sm:$0xff]
  %v470 = vld [vmem:[%s1 + $0xb0] sm:$0xff]
  %v471 = vld [vmem:[%s1 + $0xb8] sm:$0xff]
  %v472 = vld [vmem:[%s1 + $0xc0] sm:$0xff]
  %v473 = vld [vmem:[%s1 + $0xc8] sm:$0xff]
  %v474 = vld [vmem:[%s1 + $0xd0] sm:$0xff]
  %v475 = vld [vmem:[%s1 + $0xd8] sm:$0xff]
  %v476 = vld [vmem:[%s1 + $0xe0] sm:$0xff]
  %v477 = vld [vmem:[%s1 + $0xe8] sm:$0xff]
  %v478 = vld [vmem:[%s1 + $0xf0] sm:$0xff]
  %v479 = vld [vmem:[%s1 + $0xf8] sm:$0xff]
  %512 = vrot.lane.b32.xlu0 %v384, 96
  %v513 = vpop.permute.xlu0 %512
  %514 = vrot.lane.b32.xlu0 %v385, 96
  %v515 = vpop.permute.xlu0 %514
  %516 = vrot.lane.b32.xlu0 %v386, 96
  %v517 = vpop.permute.xlu0 %516
  %518 = vrot.lane.b32.xlu0 %v387, 96
  %v519 = vpop.permute.xlu0 %518
  %520 = vrot.lane.b32.xlu0 %v388, 96
  %v521 = vpop.permute.xlu0 %520
  %522 = vrot.lane.b32.xlu0 %v389, 96
  %v523 = vpop.permute.xlu0 %522
  %524 = vrot.lane.b32.xlu0 %v390, 96
  %v525 = vpop.permute.xlu0 %524
  %526 = vrot.lane.b32.xlu0 %v391, 96
  %v527 = vpop.permute.xlu0 %526
  %528 = vrot.lane.b32.xlu0 %v392, 96
  %v529 = vpop.permute.xlu0 %528
  %530 = vrot.lane.b32.xlu0 %v393, 96
  %v531 = vpop.permute.xlu0 %530
  %532 = vrot.lane.b32.xlu0 %v394, 96
  %v533 = vpop.permute.xlu0 %532
  %534 = vrot.lane.b32.xlu0 %v395, 96
  %v535 = vpop.permute.xlu0 %534
  %536 = vrot.lane.b32.xlu0 %v396, 96
  %v537 = vpop.permute.xlu0 %536
  %538 = vrot.lane.b32.xlu0 %v397, 96
  %v539 = vpop.permute.xlu0 %538
  %540 = vrot.lane.b32.xlu0 %v398, 96
  %v541 = vpop.permute.xlu0 %540
  %542 = vrot.lane.b32.xlu0 %v399, 96
  %v543 = vpop.permute.xlu0 %542
  %544 = vrot.lane.b32.xlu0 %v400, 96
  %v545 = vpop.permute.xlu0 %544
  %546 = vrot.lane.b32.xlu0 %v401, 96
  %v547 = vpop.permute.xlu0 %546
  %548 = vrot.lane.b32.xlu0 %v402, 96
  %v549 = vpop.permute.xlu0 %548
  %550 = vrot.lane.b32.xlu0 %v403, 96
  %v551 = vpop.permute.xlu0 %550
  %552 = vrot.lane.b32.xlu0 %v404, 96
  %v553 = vpop.permute.xlu0 %552
  %554 = vrot.lane.b32.xlu0 %v405, 96
  %v555 = vpop.permute.xlu0 %554
  %556 = vrot.lane.b32.xlu0 %v406, 96
  %v557 = vpop.permute.xlu0 %556
  %558 = vrot.lane.b32.xlu0 %v407, 96
  %v559 = vpop.permute.xlu0 %558
  %560 = vrot.lane.b32.xlu0 %v408, 96
  %v561 = vpop.permute.xlu0 %560
  %562 = vrot.lane.b32.xlu0 %v409, 96
  %v563 = vpop.permute.xlu0 %562
  %564 = vrot.lane.b32.xlu0 %v410, 96
  %v565 = vpop.permute.xlu0 %564
  %566 = vrot.lane.b32.xlu0 %v411, 96
  %v567 = vpop.permute.xlu0 %566
  %568 = vrot.lane.b32.xlu0 %v412, 96
  %v569 = vpop.permute.xlu0 %568
  %570 = vrot.lane.b32.xlu0 %v413, 96
  %v571 = vpop.permute.xlu0 %570
  %572 = vrot.lane.b32.xlu0 %v414, 96
  %v573 = vpop.permute.xlu0 %572
  %574 = vrot.lane.b32.xlu0 %v415, 96
  %v575 = vpop.permute.xlu0 %574
  %640 = vrot.lane.b32.xlu0 %v226, 96
  %v641 = vpop.permute.xlu0 %640
  %642 = vrot.lane.b32.xlu0 %v231, 96
  %v643 = vpop.permute.xlu0 %642
  %644 = vrot.lane.b32.xlu0 %v236, 96
  %v645 = vpop.permute.xlu0 %644
  %646 = vrot.lane.b32.xlu0 %v241, 96
  %v647 = vpop.permute.xlu0 %646
  %648 = vrot.lane.b32.xlu0 %v246, 96
  %v649 = vpop.permute.xlu0 %648
  %650 = vrot.lane.b32.xlu0 %v251, 96
  %v651 = vpop.permute.xlu0 %650
  %652 = vrot.lane.b32.xlu0 %v256, 96
  %v653 = vpop.permute.xlu0 %652
  %654 = vrot.lane.b32.xlu0 %v261, 96
  %v655 = vpop.permute.xlu0 %654
  %656 = vrot.lane.b32.xlu0 %v266, 96
  %v657 = vpop.permute.xlu0 %656
  %658 = vrot.lane.b32.xlu0 %v271, 96
  %v659 = vpop.permute.xlu0 %658
  %660 = vrot.lane.b32.xlu0 %v276, 96
  %v661 = vpop.permute.xlu0 %660
  %662 = vrot.lane.b32.xlu0 %v281, 96
  %v663 = vpop.permute.xlu0 %662
  %664 = vrot.lane.b32.xlu0 %v286, 96
  %v665 = vpop.permute.xlu0 %664
  %666 = vrot.lane.b32.xlu0 %v291, 96
  %v667 = vpop.permute.xlu0 %666
  %668 = vrot.lane.b32.xlu0 %v296, 96
  %v669 = vpop.permute.xlu0 %668
  %670 = vrot.lane.b32.xlu0 %v301, 96
  %v671 = vpop.permute.xlu0 %670
  %672 = vrot.lane.b32.xlu0 %v306, 96
  %v673 = vpop.permute.xlu0 %672
  %674 = vrot.lane.b32.xlu0 %v311, 96
  %v675 = vpop.permute.xlu0 %674
  %676 = vrot.lane.b32.xlu0 %v316, 96
  %v677 = vpop.permute.xlu0 %676
  %678 = vrot.lane.b32.xlu0 %v321, 96
  %v679 = vpop.permute.xlu0 %678
  %680 = vrot.lane.b32.xlu0 %v326, 96
  %v681 = vpop.permute.xlu0 %680
  %682 = vrot.lane.b32.xlu0 %v331, 96
  %v683 = vpop.permute.xlu0 %682
  %684 = vrot.lane.b32.xlu0 %v336, 96
  %v685 = vpop.permute.xlu0 %684
  %686 = vrot.lane.b32.xlu0 %v341, 96
  %v687 = vpop.permute.xlu0 %686
  %688 = vrot.lane.b32.xlu0 %v346, 96
  %v689 = vpop.permute.xlu0 %688
  %690 = vrot.lane.b32.xlu0 %v351, 96
  %v691 = vpop.permute.xlu0 %690
  %692 = vrot.lane.b32.xlu0 %v356, 96
  %v693 = vpop.permute.xlu0 %692
  %694 = vrot.lane.b32.xlu0 %v361, 96
  %v695 = vpop.permute.xlu0 %694
  %696 = vrot.lane.b32.xlu0 %v366, 96
  %v697 = vpop.permute.xlu0 %696
  %698 = vrot.lane.b32.xlu0 %v371, 96
  %v699 = vpop.permute.xlu0 %698
  %700 = vrot.lane.b32.xlu0 %v376, 96
  %v701 = vpop.permute.xlu0 %700
  %702 = vrot.lane.b32.xlu0 %v381, 96
  %v703 = vpop.permute.xlu0 %702
  %768 = vrot.lane.b32.xlu0 %v448, 64
  %v769 = vpop.permute.xlu0 %768
  %770 = vrot.lane.b32.xlu0 %v449, 64
  %v771 = vpop.permute.xlu0 %770
  %772 = vrot.lane.b32.xlu0 %v450, 64
  %v773 = vpop.permute.xlu0 %772
  %774 = vrot.lane.b32.xlu0 %v451, 64
  %v775 = vpop.permute.xlu0 %774
  %776 = vrot.lane.b32.xlu0 %v452, 64
  %v777 = vpop.permute.xlu0 %776
  %778 = vrot.lane.b32.xlu0 %v453, 64
  %v779 = vpop.permute.xlu0 %778
  %780 = vrot.lane.b32.xlu0 %v454, 64
  %v781 = vpop.permute.xlu0 %780
  %782 = vrot.lane.b32.xlu0 %v455, 64
  %v783 = vpop.permute.xlu0 %782
  %784 = vrot.lane.b32.xlu0 %v456, 64
  %v785 = vpop.permute.xlu0 %784
  %786 = vrot.lane.b32.xlu0 %v457, 64
  %v787 = vpop.permute.xlu0 %786
  %788 = vrot.lane.b32.xlu0 %v458, 64
  %v789 = vpop.permute.xlu0 %788
  %790 = vrot.lane.b32.xlu0 %v459, 64
  %v791 = vpop.permute.xlu0 %790
  %792 = vrot.lane.b32.xlu0 %v460, 64
  %v793 = vpop.permute.xlu0 %792
  %794 = vrot.lane.b32.xlu0 %v461, 64
  %v795 = vpop.permute.xlu0 %794
  %796 = vrot.lane.b32.xlu0 %v462, 64
  %v797 = vpop.permute.xlu0 %796
  %798 = vrot.lane.b32.xlu0 %v463, 64
  %v799 = vpop.permute.xlu0 %798
  %800 = vrot.lane.b32.xlu0 %v464, 64
  %v801 = vpop.permute.xlu0 %800
  %802 = vrot.lane.b32.xlu0 %v465, 64
  %v803 = vpop.permute.xlu0 %802
  %804 = vrot.lane.b32.xlu0 %v466, 64
  %v805 = vpop.permute.xlu0 %804
  %806 = vrot.lane.b32.xlu0 %v467, 64
  %v807 = vpop.permute.xlu0 %806
  %808 = vrot.lane.b32.xlu0 %v468, 64
  %v809 = vpop.permute.xlu0 %808
  %810 = vrot.lane.b32.xlu0 %v469, 64
  %v811 = vpop.permute.xlu0 %810
  %812 = vrot.lane.b32.xlu0 %v470, 64
  %v813 = vpop.permute.xlu0 %812
  %814 = vrot.lane.b32.xlu0 %v471, 64
  %v815 = vpop.permute.xlu0 %814
  %816 = vrot.lane.b32.xlu0 %v472, 64
  %v817 = vpop.permute.xlu0 %816
  %818 = vrot.lane.b32.xlu0 %v473, 64
  %v819 = vpop.permute.xlu0 %818
  %820 = vrot.lane.b32.xlu0 %v474, 64
  %v821 = vpop.permute.xlu0 %820
  %822 = vrot.lane.b32.xlu0 %v475, 64
  %v823 = vpop.permute.xlu0 %822
  %824 = vrot.lane.b32.xlu0 %v476, 64
  %v825 = vpop.permute.xlu0 %824
  %826 = vrot.lane.b32.xlu0 %v477, 64
  %v827 = vpop.permute.xlu0 %826
  %828 = vrot.lane.b32.xlu0 %v478, 64
  %v829 = vpop.permute.xlu0 %828
  %830 = vrot.lane.b32.xlu0 %v479, 64
  %v831 = vpop.permute.xlu0 %830
  %v864 = vsel %vm62, %v513, %v641
  %v865 = vsel %vm62, %v515, %v643
  %v866 = vsel %vm62, %v517, %v645
  %v867 = vsel %vm62, %v519, %v647
  %v868 = vsel %vm62, %v521, %v649
  %v869 = vsel %vm62, %v523, %v651
  %v870 = vsel %vm62, %v525, %v653
  %v871 = vsel %vm62, %v527, %v655
  %v872 = vsel %vm62, %v529, %v657
  %v873 = vsel %vm62, %v531, %v659
  %v874 = vsel %vm62, %v533, %v661
  %v875 = vsel %vm62, %v535, %v663
  %v876 = vsel %vm62, %v537, %v665
  %v877 = vsel %vm62, %v539, %v667
  %v878 = vsel %vm62, %v541, %v669
  %v879 = vsel %vm62, %v543, %v671
  %v880 = vsel %vm62, %v545, %v673
  %v881 = vsel %vm62, %v547, %v675
  %v882 = vsel %vm62, %v549, %v677
  %v883 = vsel %vm62, %v551, %v679
  %v884 = vsel %vm62, %v553, %v681
  %v885 = vsel %vm62, %v555, %v683
  %v886 = vsel %vm62, %v557, %v685
  %v887 = vsel %vm62, %v559, %v687
  %v888 = vsel %vm62, %v561, %v689
  %v889 = vsel %vm62, %v563, %v691
  %v890 = vsel %vm62, %v565, %v693
  %v891 = vsel %vm62, %v567, %v695
  %v892 = vsel %vm62, %v569, %v697
  %v893 = vsel %vm62, %v571, %v699
  %v894 = vsel %vm62, %v573, %v701
  %v895 = vsel %vm62, %v575, %v703
  %vm896 = vcmask 523264
  %v897 = vsel %vm896, %v864, %v769
  %v898 = vsel %vm896, %v865, %v771
  %v899 = vsel %vm896, %v866, %v773
  %v900 = vsel %vm896, %v867, %v775
  %v901 = vsel %vm896, %v868, %v777
  %v902 = vsel %vm896, %v869, %v779
  %v903 = vsel %vm896, %v870, %v781
  %v904 = vsel %vm896, %v871, %v783
  %v905 = vsel %vm896, %v872, %v785
  %v906 = vsel %vm896, %v873, %v787
  %v907 = vsel %vm896, %v874, %v789
  %v908 = vsel %vm896, %v875, %v791
  %v909 = vsel %vm896, %v876, %v793
  %v910 = vsel %vm896, %v877, %v795
  %v911 = vsel %vm896, %v878, %v797
  %v912 = vsel %vm896, %v879, %v799
  %v913 = vsel %vm896, %v880, %v801
  %v914 = vsel %vm896, %v881, %v803
  %v915 = vsel %vm896, %v882, %v805
  %v916 = vsel %vm896, %v883, %v807
  %v917 = vsel %vm896, %v884, %v809
  %v918 = vsel %vm896, %v885, %v811
  %v919 = vsel %vm896, %v886, %v813
  %v920 = vsel %vm896, %v887, %v815
  %v921 = vsel %vm896, %v888, %v817
  %v922 = vsel %vm896, %v889, %v819
  %v923 = vsel %vm896, %v890, %v821
  %v924 = vsel %vm896, %v891, %v823
  %v925 = vsel %vm896, %v892, %v825
  %v926 = vsel %vm896, %v893, %v827
  %v927 = vsel %vm896, %v894, %v829
  %v928 = vsel %vm896, %v895, %v831
  %v929 = vpack.c.bf16 %v898, %v897
  %v930 = vpack.c.bf16 %v900, %v899
  %v931 = vpack.c.bf16 %v902, %v901
  %v932 = vpack.c.bf16 %v904, %v903
  %v933 = vpack.c.bf16 %v906, %v905
  %v934 = vpack.c.bf16 %v908, %v907
  %v935 = vpack.c.bf16 %v910, %v909
  %v936 = vpack.c.bf16 %v912, %v911
  %v937 = vpack.c.bf16 %v914, %v913
  %v938 = vpack.c.bf16 %v916, %v915
  %v939 = vpack.c.bf16 %v918, %v917
  %v940 = vpack.c.bf16 %v920, %v919
  %v941 = vpack.c.bf16 %v922, %v921
  %v942 = vpack.c.bf16 %v924, %v923
  %v943 = vpack.c.bf16 %v926, %v925
  %v944 = vpack.c.bf16 %v928, %v927
  %v961 = vunpack.c.l.b16 %v929
  %v962 = vunpack.c.h.b16 %v929
  %v963 = vunpack.c.l.b16 %v930
  %v964 = vunpack.c.h.b16 %v930
  %v965 = vunpack.c.l.b16 %v931
  %v966 = vunpack.c.h.b16 %v931
  %v967 = vunpack.c.l.b16 %v932
  %v968 = vunpack.c.h.b16 %v932
  %v969 = vunpack.c.l.b16 %v933
  %v970 = vunpack.c.h.b16 %v933
  %v971 = vunpack.c.l.b16 %v934
  %v972 = vunpack.c.h.b16 %v934
  %v973 = vunpack.c.l.b16 %v935
  %v974 = vunpack.c.h.b16 %v935
  %v975 = vunpack.c.l.b16 %v936
  %v976 = vunpack.c.h.b16 %v936
  %v977 = vunpack.c.l.b16 %v937
  %v978 = vunpack.c.h.b16 %v937
  %v979 = vunpack.c.l.b16 %v938
  %v980 = vunpack.c.h.b16 %v938
  %v981 = vunpack.c.l.b16 %v939
  %v982 = vunpack.c.h.b16 %v939
  %v983 = vunpack.c.l.b16 %v940
  %v984 = vunpack.c.h.b16 %v940
  %v985 = vunpack.c.l.b16 %v941
  %v986 = vunpack.c.h.b16 %v941
  %v987 = vunpack.c.l.b16 %v942
  %v988 = vunpack.c.h.b16 %v942
  %v989 = vunpack.c.l.b16 %v943
  %v990 = vunpack.c.h.b16 %v943
  %v991 = vunpack.c.l.b16 %v944
  %v992 = vunpack.c.h.b16 %v944
  %v993 = vpack.c.b16 %v961, %v961
  %v994 = vpack.c.b16 %v962, %v962
  %v995 = vpack.c.b16 %v963, %v963
  %v996 = vpack.c.b16 %v964, %v964
  %v997 = vpack.c.b16 %v965, %v965
  %v998 = vpack.c.b16 %v966, %v966
  %v999 = vpack.c.b16 %v967, %v967
  %v1000 = vpack.c.b16 %v968, %v968
  %v1001 = vpack.c.b16 %v969, %v969
  %v1002 = vpack.c.b16 %v970, %v970
  %v1003 = vpack.c.b16 %v971, %v971
  %v1004 = vpack.c.b16 %v972, %v972
  %v1005 = vpack.c.b16 %v973, %v973
  %v1006 = vpack.c.b16 %v974, %v974
  %v1007 = vpack.c.b16 %v975, %v975
  %v1008 = vpack.c.b16 %v976, %v976
  %v1009 = vpack.c.b16 %v977, %v977
  %v1010 = vpack.c.b16 %v978, %v978
  %v1011 = vpack.c.b16 %v979, %v979
  %v1012 = vpack.c.b16 %v980, %v980
  %v1013 = vpack.c.b16 %v981, %v981
  %v1014 = vpack.c.b16 %v982, %v982
  %v1015 = vpack.c.b16 %v983, %v983
  %v1016 = vpack.c.b16 %v984, %v984
  %v1017 = vpack.c.b16 %v985, %v985
  %v1018 = vpack.c.b16 %v986, %v986
  %v1019 = vpack.c.b16 %v987, %v987
  %v1020 = vpack.c.b16 %v988, %v988
  %v1021 = vpack.c.b16 %v989, %v989
  %v1022 = vpack.c.b16 %v990, %v990
  %v1023 = vpack.c.b16 %v991, %v991
  %v1024 = vpack.c.b16 %v992, %v992
  %vm1057 = vcmask 543744
  %1058 = vst.msk [vmem:[%s5] sm:$0xf] %vm1057, %v993
  %1059 = vst.msk [vmem:[%s5 + $0x4] sm:$0xf] %vm1057, %v994
  %1060 = vst.msk [vmem:[%s5 + $0x8] sm:$0xf] %vm1057, %v995
  %1061 = vst.msk [vmem:[%s5 + $0xc] sm:$0xf] %vm1057, %v996
  %1062 = vst.msk [vmem:[%s5 + $0x10] sm:$0xf] %vm1057, %v997
  %1063 = vst.msk [vmem:[%s5 + $0x14] sm:$0xf] %vm1057, %v998
  %1064 = vst.msk [vmem:[%s5 + $0x18] sm:$0xf] %vm1057, %v999
  %1065 = vst.msk [vmem:[%s5 + $0x1c] sm:$0xf] %vm1057, %v1000
  %1066 = vst.msk [vmem:[%s5 + $0x20] sm:$0xf] %vm1057, %v1001
  %1067 = vst.msk [vmem:[%s5 + $0x24] sm:$0xf] %vm1057, %v1002
  %1068 = vst.msk [vmem:[%s5 + $0x28] sm:$0xf] %vm1057, %v1003
  %1069 = vst.msk [vmem:[%s5 + $0x2c] sm:$0xf] %vm1057, %v1004
  %1070 = vst.msk [vmem:[%s5 + $0x30] sm:$0xf] %vm1057, %v1005
  %1071 = vst.msk [vmem:[%s5 + $0x34] sm:$0xf] %vm1057, %v1006
  %1072 = vst.msk [vmem:[%s5 + $0x38] sm:$0xf] %vm1057, %v1007
  %1073 = vst.msk [vmem:[%s5 + $0x3c] sm:$0xf] %vm1057, %v1008
  %1074 = vst.msk [vmem:[%s5 + $0x40] sm:$0xf] %vm1057, %v1009
  %1075 = vst.msk [vmem:[%s5 + $0x44] sm:$0xf] %vm1057, %v1010
  %1076 = vst.msk [vmem:[%s5 + $0x48] sm:$0xf] %vm1057, %v1011
  %1077 = vst.msk [vmem:[%s5 + $0x4c] sm:$0xf] %vm1057, %v1012
  %1078 = vst.msk [vmem:[%s5 + $0x50] sm:$0xf] %vm1057, %v1013
  %1079 = vst.msk [vmem:[%s5 + $0x54] sm:$0xf] %vm1057, %v1014
  %1080 = vst.msk [vmem:[%s5 + $0x58] sm:$0xf] %vm1057, %v1015
  %1081 = vst.msk [vmem:[%s5 + $0x5c] sm:$0xf] %vm1057, %v1016
  %1082 = vst.msk [vmem:[%s5 + $0x60] sm:$0xf] %vm1057, %v1017
  %1083 = vst.msk [vmem:[%s5 + $0x64] sm:$0xf] %vm1057, %v1018
  %1084 = vst.msk [vmem:[%s5 + $0x68] sm:$0xf] %vm1057, %v1019
  %1085 = vst.msk [vmem:[%s5 + $0x6c] sm:$0xf] %vm1057, %v1020
  %1086 = vst.msk [vmem:[%s5 + $0x70] sm:$0xf] %vm1057, %v1021
  %1087 = vst.msk [vmem:[%s5 + $0x74] sm:$0xf] %vm1057, %v1022
  %1088 = vst.msk [vmem:[%s5 + $0x78] sm:$0xf] %vm1057, %v1023
  %1089 = vst.msk [vmem:[%s5 + $0x7c] sm:$0xf] %vm1057, %v1024
  // Predicated region
  $region18: #{tpu_custom_call.1} parent=0 // pred_check
    _
  $region19: #{tpu_custom_call.1} parent=0 // pred_check_branch
    %1091 = sbr.rel (0) target = $region21
  $region20: #{tpu_custom_call.1} parent=0 // pred_region
    _
  $region21: #{tpu_custom_call.1} parent=0 // pred_fallthru
    _
  // Predicated region
  $region22: #{tpu_custom_call.1} parent=0 // pred_check
    _
  $region23: #{tpu_custom_call.1} parent=0 // pred_check_branch
    %1093 = sbr.rel (0) target = $region25
  $region24: #{tpu_custom_call.1} parent=0 // pred_region
    _
  $region25: #{tpu_custom_call.1} parent=0 // pred_fallthru
    _
  // Predicated region
  $region26: #{tpu_custom_call.1} parent=0 // pred_check
    _
  $region27: #{tpu_custom_call.1} parent=0 // pred_check_branch
    %1095 = sbr.rel (0) target = $region29
  $region28: #{tpu_custom_call.1} parent=0 // pred_region
    _
  $region29: #{tpu_custom_call.1} parent=0 // pred_fallthru
    _
  // Predicated region
  $region30: #{tpu_custom_call.1} parent=0 // pred_check
    _
  $region31: #{tpu_custom_call.1} parent=0 // pred_check_branch
    %1097 = sbr.rel (0) target = $region33
  $region32: #{tpu_custom_call.1} parent=0 // pred_region
    _
  $region33: #{tpu_custom_call.1} parent=0 // pred_fallthru
    _

</llo_original>
